<compile_context>
chip_gen: v6e
topology: v6e:2x2x1
jax: 0.10.0
libtpu: 0.0.40
codegen_flags: <defaults>
</compile_context>

<pallas_src>
import jax
import jax.numpy as jnp
from jax.experimental import pallas as pl
from jax.experimental.pallas import tpu as pltpu


def _ssi_loss_kernel(pred_ref, targ_ref, mask_ref, num_ref, den_ref):
    # Up-cast in-kernel; all statistics / solve stay in f32.
    p = pred_ref[...].astype(jnp.float32)   # (Bb, R, C)
    t = targ_ref[...].astype(jnp.float32)   # (Bb, R, C)
    m = mask_ref[...].astype(jnp.float32)   # (Bb, R, C), int8 {0,1} -> f32

    mp = m * p
    mt = m * t

    def _rsum(x):
        # Explicit reduction order: VPU/sublane adds over the row axis first
        # (-> (Bb,1,C) partial), then a single cross-lane (XLU) reduce.
        return jnp.sum(jnp.sum(x, axis=1, keepdims=True), axis=2, keepdims=True)

    a_00 = _rsum(mp * p)                     # (Bb,1,1)
    a_01 = _rsum(mp)
    a_11 = _rsum(m)
    b_0 = _rsum(mt * p)
    b_1 = _rsum(mt)

    det = a_00 * a_11 - a_01 * a_01
    valid = det > 0.0
    safe_det = jnp.where(valid, det, jnp.float32(1.0))
    inv_det = jnp.where(valid, 1.0 / safe_det, jnp.float32(0.0))
    scale = (a_11 * b_0 - a_01 * b_1) * inv_det     # x_0 (0 when det <= 0)
    shift = (-a_01 * b_0 + a_00 * b_1) * inv_det    # x_1 (0 when det <= 0)

    # m * |scale*p + shift - t| == |scale*mp + shift*m - mt| for m in {0,1}.
    abs_err = jnp.abs(scale * mp + shift * m - mt)

    num_ref[...] = _rsum(abs_err)
    den_ref[...] = a_11


def _ceil_to(x, n):
    return ((x + n - 1) // n) * n


def scale_and_shift_invariant_loss(prediction, target, mask):
    """JAX/Pallas equivalent of ScaleAndShiftInvariantLoss.forward.

    Args:
      prediction: (B, 1, H, W) float (f32 or bf16)
      target:     (B, 1, H, W) float
      mask:       (B, 1, H, W) bool or {0,1}
    Returns:
      scalar float32 loss.
    """
    LANES = 128
    F32 = 4

    # Squeeze channel dim; keep native dtypes (mask goes to 1-byte int8).
    p = jnp.squeeze(prediction, axis=1)                       # (B, H, W)
    t = jnp.squeeze(target, axis=1)                           # (B, H, W)
    m = jnp.squeeze(mask, axis=1)
    if m.dtype != jnp.int8:
        m = m.astype(jnp.int8)                                # {0,1}

    B, H, W = p.shape
    hw = H * W

    if hw % LANES == 0:
        # Lane-dense view: free reshape (contiguous collapse + split), no copy.
        R, C = hw // LANES, LANES
        def _view(x):
            return x.reshape(B, R, C)
    else:
        # Fallback: native (B, H, W).  Last two block dims equal the full array
        # dims -> valid BlockSpec without any padding copy (wastes lanes when
        # W is small, but stays correct and copy-free).
        R, C = H, W
        def _view(x):
            return x

    p3, t3, m3 = _view(p), _view(t), _view(m)

    # ----- VMEM footprint model (per element of the padded VMEM tile) -------
    # Inputs are double-buffered by the BlockSpec pipeline; the f32 in-kernel
    # intermediates (p, t, m up-casts, mp, mt, abs_err) are single-buffered but
    # dominate for narrow input dtypes.  Be conservative (compiler may reuse).
    elems_vmem = _ceil_to(R, 8) * _ceil_to(C, LANES)          # per image
    n_f32_temps = 6
    per_elem_bytes = (2 * (p3.dtype.itemsize + t3.dtype.itemsize
                           + m3.dtype.itemsize) + n_f32_temps * F32)
    per_image_bytes = elems_vmem * per_elem_bytes

    # ----- Generation-aware VMEM budget --------------------------------------
    try:
        info = pltpu.get_tpu_info()
        vmem_cap = int(getattr(info, "vmem_capacity_bytes", 64 << 20))
    except Exception:  # pragma: no cover - conservative fallback (v7x)
        vmem_cap = 64 << 20
    vmem_budget = (vmem_cap * 3) // 4                         # ~25% headroom
    # Bigger per-step tiles where HBM is faster relative to step overhead.
    target_elems = (5 << 18) if vmem_cap <= (64 << 20) else (1 << 21)

    # ----- Batch blocking: bb must divide B (no batch padding, ever) ---------
    max_bb_vmem = max(1, vmem_budget // max(per_image_bytes, 1))
    divisors = [d for d in range(1, B + 1) if B % d == 0]
    fits = [d for d in divisors if d <= max_bb_vmem]
    if not fits:
        # TODO(synk): single image exceeds the VMEM budget -> needs the
        # two-phase spatial split; fall back to one image per step.
        fits = [1]
    capped = [d for d in fits if d * elems_vmem <= target_elems]
    if not capped:
        capped = [min(fits)]
    bb = max(capped)
    # Prefer >= 4 grid steps (>= 2 per TensorCore on v7x) when B allows and the
    # per-step tile stays large enough to amortize per-step overhead.
    MIN_STEP_ELEMS = 256 * 1024
    if B // bb < 4:
        better = [d for d in capped
                  if B // d >= 4 and d * elems_vmem >= MIN_STEP_ELEMS]
        if better:
            bb = max(better)
    n_blocks = B // bb

    # Always set an explicit, capacity-respecting VMEM limit from the real
    # footprint (covers v5e's small default scoped limit without exceeding
    # v7x's 64 MiB physical VMEM).
    bytes_per_step = bb * per_image_bytes + (1 << 20)
    vmem_limit = int(min(max(bytes_per_step, 16 << 20),
                         max(vmem_cap - (4 << 20), 16 << 20)))

    in_tile = pl.BlockSpec((bb, R, C), lambda i: (i, 0, 0))
    out_tile = pl.BlockSpec((bb, 1, 1), lambda i: (i, 0, 0))

    num, den = pl.pallas_call(
        _ssi_loss_kernel,
        out_shape=(
            jax.ShapeDtypeStruct((B, 1, 1), jnp.float32),
            jax.ShapeDtypeStruct((B, 1, 1), jnp.float32),
        ),
        grid_spec=pltpu.PrefetchScalarGridSpec(
            num_scalar_prefetch=0,
            grid=(n_blocks,),
            in_specs=[in_tile, in_tile, in_tile],
            out_specs=(out_tile, out_tile),
        ),
        compiler_params=pltpu.CompilerParams(
            dimension_semantics=("parallel",),   # independent per-block outputs
            vmem_limit_bytes=vmem_limit,
        ),
    )(p3, t3, m3)

    # l1_loss(scaled_pred[mask], target[mask]) == masked mean over all batches.
    return (jnp.sum(num) / jnp.sum(den)).astype(jnp.float32)


def _reference_loss(prediction, target, mask):
    """Pure-JAX reference mirroring the PyTorch semantics."""
    p = jnp.squeeze(prediction, axis=1).astype(jnp.float32)
    t = jnp.squeeze(target, axis=1).astype(jnp.float32)
    m = jnp.squeeze(mask, axis=1).astype(jnp.float32)

    a_00 = jnp.sum(m * p * p, axis=(1, 2))
    a_01 = jnp.sum(m * p, axis=(1, 2))
    a_11 = jnp.sum(m, axis=(1, 2))
    b_0 = jnp.sum(m * p * t, axis=(1, 2))
    b_1 = jnp.sum(m * t, axis=(1, 2))
    det = a_00 * a_11 - a_01 * a_01
    valid = det > 0
    safe = jnp.where(valid, det, 1.0)
    x0 = jnp.where(valid, (a_11 * b_0 - a_01 * b_1) / safe, 0.0)
    x1 = jnp.where(valid, (-a_01 * b_0 + a_00 * b_1) / safe, 0.0)
    scaled = x0[:, None, None] * p + x1[:, None, None]
    return jnp.sum(m * jnp.abs(scaled - t)) / jnp.sum(m)


if __name__ == "__main__":
    key = jax.random.PRNGKey(0)
    k1, k2, k3 = jax.random.split(key, 3)

    B, C, H, W = 2, 1, 16, 16
    prediction = jax.random.uniform(k1, (B, C, H, W), jnp.float32, 0.1, 10.0)
    target = jax.random.uniform(k2, (B, C, H, W), jnp.float32, 0.1, 10.0)
    mask = jax.random.bernoulli(k3, 0.8, (B, C, H, W))

    loss = jax.block_until_ready(
        scale_and_shift_invariant_loss(prediction, target, mask))
    ref = jax.block_until_ready(_reference_loss(prediction, target, mask))

    assert jnp.isfinite(loss), "loss is not finite"
    assert jnp.allclose(loss, ref, rtol=1e-5, atol=1e-5), (loss, ref)
    print("KERNEL_OK")
</pallas_src>

<mosaic_0001>
module attributes {stable_mosaic.version = 11 : i64} {
  func.func @_ssi_loss_kernel(%arg0: i32, %arg1: memref<2x2x128xf32, #tpu.memory_space<vmem>>, %arg2: memref<2x2x128xf32, #tpu.memory_space<vmem>>, %arg3: memref<2x2x128xi8, #tpu.memory_space<vmem>>, %arg4: memref<2x1x1xf32, #tpu.memory_space<vmem>>, %arg5: memref<2x1x1xf32, #tpu.memory_space<vmem>>) attributes {dimension_semantics = [#tpu.dimension_semantics<parallel>], iteration_bounds = array<i64: 1>, scalar_prefetch = 0 : i64, scratch_operands = 0 : i64, tpu.core_type = #tpu.core_type<tc>, window_params = [{transform_indices = @transform_0, window_bounds = array<i64: 2, 2, 128>}, {transform_indices = @transform_1, window_bounds = array<i64: 2, 2, 128>}, {transform_indices = @transform_2, window_bounds = array<i64: 2, 2, 128>}, {transform_indices = @transform_3, window_bounds = array<i64: 2, 1, 1>}, {transform_indices = @transform_4, window_bounds = array<i64: 2, 1, 1>}]} {
    %c0 = arith.constant 0 : index
    %c0_0 = arith.constant 0 : index
    %c0_1 = arith.constant 0 : index
    %0 = vector.load %arg1[%c0, %c0_0, %c0_1] : memref<2x2x128xf32, #tpu.memory_space<vmem>>, vector<2x2x128xf32>
    %c0_2 = arith.constant 0 : index
    %c0_3 = arith.constant 0 : index
    %c0_4 = arith.constant 0 : index
    %1 = vector.load %arg2[%c0_2, %c0_3, %c0_4] : memref<2x2x128xf32, #tpu.memory_space<vmem>>, vector<2x2x128xf32>
    %c0_5 = arith.constant 0 : index
    %c0_6 = arith.constant 0 : index
    %c0_7 = arith.constant 0 : index
    %2 = vector.load %arg3[%c0_5, %c0_6, %c0_7] : memref<2x2x128xi8, #tpu.memory_space<vmem>>, vector<2x2x128xi8>
    %3 = arith.sitofp %2 : vector<2x2x128xi8> to vector<2x2x128xf32>
    %4 = arith.mulf %3, %0 : vector<2x2x128xf32>
    %5 = arith.mulf %3, %1 : vector<2x2x128xf32>
    %6 = arith.mulf %4, %0 : vector<2x2x128xf32>
    %cst = arith.constant dense<0.000000e+00> : vector<2x128xf32>
    %7 = vector.multi_reduction <add>, %6, %cst [1] : vector<2x2x128xf32> to vector<2x128xf32>
    %8 = vector.shape_cast %7 : vector<2x128xf32> to vector<2x1x128xf32>
    %cst_8 = arith.constant dense<0.000000e+00> : vector<2x1xf32>
    %9 = vector.multi_reduction <add>, %8, %cst_8 [2] : vector<2x1x128xf32> to vector<2x1xf32>
    %10 = vector.shape_cast %9 : vector<2x1xf32> to vector<2x1x1xf32>
    %cst_9 = arith.constant dense<0.000000e+00> : vector<2x128xf32>
    %11 = vector.multi_reduction <add>, %4, %cst_9 [1] : vector<2x2x128xf32> to vector<2x128xf32>
    %12 = vector.shape_cast %11 : vector<2x128xf32> to vector<2x1x128xf32>
    %cst_10 = arith.constant dense<0.000000e+00> : vector<2x1xf32>
    %13 = vector.multi_reduction <add>, %12, %cst_10 [2] : vector<2x1x128xf32> to vector<2x1xf32>
    %14 = vector.shape_cast %13 : vector<2x1xf32> to vector<2x1x1xf32>
    %cst_11 = arith.constant dense<0.000000e+00> : vector<2x128xf32>
    %15 = vector.multi_reduction <add>, %3, %cst_11 [1] : vector<2x2x128xf32> to vector<2x128xf32>
    %16 = vector.shape_cast %15 : vector<2x128xf32> to vector<2x1x128xf32>
    %cst_12 = arith.constant dense<0.000000e+00> : vector<2x1xf32>
    %17 = vector.multi_reduction <add>, %16, %cst_12 [2] : vector<2x1x128xf32> to vector<2x1xf32>
    %18 = vector.shape_cast %17 : vector<2x1xf32> to vector<2x1x1xf32>
    %19 = arith.mulf %5, %0 : vector<2x2x128xf32>
    %cst_13 = arith.constant dense<0.000000e+00> : vector<2x128xf32>
    %20 = vector.multi_reduction <add>, %19, %cst_13 [1] : vector<2x2x128xf32> to vector<2x128xf32>
    %21 = vector.shape_cast %20 : vector<2x128xf32> to vector<2x1x128xf32>
    %cst_14 = arith.constant dense<0.000000e+00> : vector<2x1xf32>
    %22 = vector.multi_reduction <add>, %21, %cst_14 [2] : vector<2x1x128xf32> to vector<2x1xf32>
    %23 = vector.shape_cast %22 : vector<2x1xf32> to vector<2x1x1xf32>
    %cst_15 = arith.constant dense<0.000000e+00> : vector<2x128xf32>
    %24 = vector.multi_reduction <add>, %5, %cst_15 [1] : vector<2x2x128xf32> to vector<2x128xf32>
    %25 = vector.shape_cast %24 : vector<2x128xf32> to vector<2x1x128xf32>
    %cst_16 = arith.constant dense<0.000000e+00> : vector<2x1xf32>
    %26 = vector.multi_reduction <add>, %25, %cst_16 [2] : vector<2x1x128xf32> to vector<2x1xf32>
    %27 = vector.shape_cast %26 : vector<2x1xf32> to vector<2x1x1xf32>
    %28 = arith.mulf %10, %18 : vector<2x1x1xf32>
    %29 = arith.mulf %14, %14 : vector<2x1x1xf32>
    %30 = arith.subf %28, %29 : vector<2x1x1xf32>
    %cst_17 = arith.constant 0.000000e+00 : f32
    %31 = vector.broadcast %cst_17 : f32 to vector<2x1x1xf32>
    %32 = arith.cmpf ogt, %30, %31 : vector<2x1x1xf32>
    %cst_18 = arith.constant 1.000000e+00 : f32
    %33 = vector.broadcast %cst_18 : f32 to vector<2x1x1xf32>
    %34 = arith.select %32, %30, %33 : vector<2x1x1xi1>, vector<2x1x1xf32>
    %cst_19 = arith.constant 1.000000e+00 : f32
    %35 = vector.broadcast %cst_19 : f32 to vector<2x1x1xf32>
    %36 = arith.divf %35, %34 : vector<2x1x1xf32>
    %cst_20 = arith.constant 0.000000e+00 : f32
    %37 = vector.broadcast %cst_20 : f32 to vector<2x1x1xf32>
    %38 = arith.select %32, %36, %37 : vector<2x1x1xi1>, vector<2x1x1xf32>
    %39 = arith.mulf %18, %23 : vector<2x1x1xf32>
    %40 = arith.mulf %14, %27 : vector<2x1x1xf32>
    %41 = arith.subf %39, %40 : vector<2x1x1xf32>
    %42 = arith.mulf %41, %38 : vector<2x1x1xf32>
    %cst_21 = arith.constant 0.000000e+00 : f32
    %43 = vector.broadcast %cst_21 : f32 to vector<2x1x1xf32>
    %44 = arith.subf %43, %14 : vector<2x1x1xf32>
    %45 = arith.mulf %44, %23 : vector<2x1x1xf32>
    %46 = arith.mulf %10, %27 : vector<2x1x1xf32>
    %47 = arith.addf %45, %46 : vector<2x1x1xf32>
    %48 = arith.mulf %47, %38 : vector<2x1x1xf32>
    %49 = vector.broadcast %42 : vector<2x1x1xf32> to vector<2x2x128xf32>
    %50 = arith.mulf %49, %4 : vector<2x2x128xf32>
    %51 = vector.broadcast %48 : vector<2x1x1xf32> to vector<2x2x128xf32>
    %52 = arith.mulf %51, %3 : vector<2x2x128xf32>
    %53 = arith.addf %50, %52 : vector<2x2x128xf32>
    %54 = arith.subf %53, %5 : vector<2x2x128xf32>
    %55 = math.absf %54 : vector<2x2x128xf32>
    %cst_22 = arith.constant dense<0.000000e+00> : vector<2x128xf32>
    %56 = vector.multi_reduction <add>, %55, %cst_22 [1] : vector<2x2x128xf32> to vector<2x128xf32>
    %57 = vector.shape_cast %56 : vector<2x128xf32> to vector<2x1x128xf32>
    %cst_23 = arith.constant dense<0.000000e+00> : vector<2x1xf32>
    %58 = vector.multi_reduction <add>, %57, %cst_23 [2] : vector<2x1x128xf32> to vector<2x1xf32>
    %59 = vector.shape_cast %58 : vector<2x1xf32> to vector<2x1x1xf32>
    %c0_24 = arith.constant 0 : index
    %c0_25 = arith.constant 0 : index
    %c0_26 = arith.constant 0 : index
    %60 = vector.load %arg4[%c0_24, %c0_25, %c0_26] : memref<2x1x1xf32, #tpu.memory_space<vmem>>, vector<2x1x1xf32>
    tpu.vector_store %arg4[%c0_24, %c0_25, %c0_26], %59 {strides = array<i32>} : memref<2x1x1xf32, #tpu.memory_space<vmem>>, vector<2x1x1xf32>,
    %c0_27 = arith.constant 0 : index
    %c0_28 = arith.constant 0 : index
    %c0_29 = arith.constant 0 : index
    %61 = vector.load %arg5[%c0_27, %c0_28, %c0_29] : memref<2x1x1xf32, #tpu.memory_space<vmem>>, vector<2x1x1xf32>
    tpu.vector_store %arg5[%c0_27, %c0_28, %c0_29], %18 {strides = array<i32>} : memref<2x1x1xf32, #tpu.memory_space<vmem>>, vector<2x1x1xf32>,
    return
  }
  func.func @transform_0(%arg0: i32) -> (i32, i32, i32) {
    %c0_i32 = arith.constant 0 : i32
    %c0_i32_0 = arith.constant 0 : i32
    %c0_i32_1 = arith.constant 0 : i32
    return %arg0, %c0_i32, %c0_i32_0 : i32, i32, i32
  }
  func.func @transform_1(%arg0: i32) -> (i32, i32, i32) {
    %c0_i32 = arith.constant 0 : i32
    %c0_i32_0 = arith.constant 0 : i32
    %c0_i32_1 = arith.constant 0 : i32
    return %arg0, %c0_i32, %c0_i32_0 : i32, i32, i32
  }
  func.func @transform_2(%arg0: i32) -> (i32, i32, i32) {
    %c0_i32 = arith.constant 0 : i32
    %c0_i32_0 = arith.constant 0 : i32
    %c0_i32_1 = arith.constant 0 : i32
    return %arg0, %c0_i32, %c0_i32_0 : i32, i32, i32
  }
  func.func @transform_3(%arg0: i32) -> (i32, i32, i32) {
    %c0_i32 = arith.constant 0 : i32
    %c0_i32_0 = arith.constant 0 : i32
    %c0_i32_1 = arith.constant 0 : i32
    return %arg0, %c0_i32, %c0_i32_0 : i32, i32, i32
  }
  func.func @transform_4(%arg0: i32) -> (i32, i32, i32) {
    %c0_i32 = arith.constant 0 : i32
    %c0_i32_0 = arith.constant 0 : i32
    %c0_i32_1 = arith.constant 0 : i32
    return %arg0, %c0_i32, %c0_i32_0 : i32, i32, i32
  }
}

</mosaic_0001>

<llo_original>
// kernel: tpu_custom_call.1
$region0: #{tpu_custom_call.1}
  #allocation0 [shape = 'u32[]', space=smem, size = 0x4, offset = 0x4, fixed_abs, tag = 'smem constant byte address 0x4 - core index']
  #allocation1 [shape = 'u32[144,128]{1,0:T(1,128)}', space=vmem, size = 0x12000, scoped, tag = 'internal scratch']
  %s0 = inlined_call_operand.hbm [shape: f32[2,2,128], index: 0, kind: input, shape index: {}]
  %s1 = inlined_call_operand.hbm [shape: f32[2,2,128], index: 1, kind: input, shape index: {}]
  %s2 = inlined_call_operand.vmem [shape: s8[2,2,128], index: 2, kind: input, shape index: {}]
  %s3 = inlined_call_operand.vmem [shape: f32[2,1,1], index: 3, kind: output, shape index: {0}]
  %s4 = inlined_call_operand.vmem [shape: f32[2,1,1], index: 4, kind: output, shape index: {1}]
  %5 = xla_tuple %s3, %s4
  %s6 = sld [smem:[#allocation0]]
  $region38: #{tpu_custom_call.1} parent=0
    _
  %s8 = ssub.s32 1, %s6
  %s9 = scalar_select 0, %s8, %s6
  $region1: #{tpu_custom_call.1} parent=0
    #allocation2 [shape = 'u8[2048]{0}', space=vmem, size = 0x800, scoped, tag = 'input window, operand 0, single buffered']
    #allocation3 [shape = 's32[1]{0}', space=sflag, size = 0x4, scoped, tag = 'scoped memory for tpu_custom_call.1']
    #allocation4 [shape = 'u8[2048]{0}', space=vmem, size = 0x800, scoped, tag = 'input window, operand 1, single buffered']
    #allocation5 [shape = 's32[1]{0}', space=sflag, size = 0x4, scoped, tag = 'scoped memory for tpu_custom_call.1']
    %10 = vsyncpa [#allocation3], 0
    %11 = vsyncpa [#allocation5], 0
    // Predicated region
    $region2: #{tpu_custom_call.1} parent=1 // pred_check
      _
    $region3: #{tpu_custom_call.1} parent=1 // pred_check_branch
      %13 = sbr.rel (0) target = $region5
    $region4: #{tpu_custom_call.1} parent=1 // pred_region
      %s15 = ssub.s32 64, 64
      %16 = vsyncadd [#allocation3], %s15
      %s17 = sshll.u32 [#allocation2], 4
      %s18 = int_to_ptr.vmem [resolvable:$true] %s17
      %23 = dma.hbm_to_vmem [thread:$0]  %s0, 64, %s18, [#allocation3], 32, 32, 2
    $region5: #{tpu_custom_call.1} parent=1 // pred_fallthru
      _
    // Predicated region
    $region6: #{tpu_custom_call.1} parent=1 // pred_check
      _
    $region7: #{tpu_custom_call.1} parent=1 // pred_check_branch
      %25 = sbr.rel (0) target = $region9
    $region8: #{tpu_custom_call.1} parent=1 // pred_region
      %s27 = ssub.s32 64, 64
      %28 = vsyncadd [#allocation5], %s27
      %s29 = sshll.u32 [#allocation4], 4
      %s30 = int_to_ptr.vmem [resolvable:$true] %s29
      %35 = dma.hbm_to_vmem [thread:$0]  %s1, 64, %s30, [#allocation5], 32, 32, 2
    $region9: #{tpu_custom_call.1} parent=1 // pred_fallthru
      _
    // Predicated region
    $region10: #{tpu_custom_call.1} parent=1 // pred_check
      _
    $region11: #{tpu_custom_call.1} parent=1 // pred_check_branch
      %37 = sbr.rel (0) target = $region13
    $region12: #{tpu_custom_call.1} parent=1 // pred_region
      _
    $region13: #{tpu_custom_call.1} parent=1 // pred_fallthru
      _
    // Predicated region
    $region14: #{tpu_custom_call.1} parent=1 // pred_check
      _
    $region15: #{tpu_custom_call.1} parent=1 // pred_check_branch
      %39 = sbr.rel (0) target = $region17
    $region16: #{tpu_custom_call.1} parent=1 // pred_region
      %40 = dma.done [#allocation3], 64
    $region17: #{tpu_custom_call.1} parent=1 // pred_fallthru
      _
    // Predicated region
    $region18: #{tpu_custom_call.1} parent=1 // pred_check
      _
    $region19: #{tpu_custom_call.1} parent=1 // pred_check_branch
      %42 = sbr.rel (0) target = $region21
    $region20: #{tpu_custom_call.1} parent=1 // pred_region
      %43 = dma.done [#allocation5], 64
    $region21: #{tpu_custom_call.1} parent=1 // pred_fallthru
      _
    %v44 = vld [vmem:[#allocation2] sm:$0x3]
    %v45 = vld [vmem:[#allocation2 + $0x2] sm:$0x3]
    %v46 = vld [vmem:[#allocation4] sm:$0x3]
    %v47 = vld [vmem:[#allocation4 + $0x2] sm:$0x3]
    %v48 = vld [vmem:[%s2] sm:$0x1]
    %v49 = vld [vmem:[%s2 + $0x1] sm:$0x1]
    %v50 = vunpack.c.0.s8 %v48
    %v51 = vunpack.c.0.s8 %v49
    %v52 = vcvt.s32.f32 %v50
    %v53 = vcvt.s32.f32 %v51
    %v54 = vmul.f32 %v52, %v44
    %v55 = vmul.f32 %v53, %v45
    %v56 = vmul.f32 %v52, %v46
    %v57 = vmul.f32 %v53, %v47
    %v58 = vmul.f32 %v54, %v44
    %v59 = vmul.f32 %v55, %v45
    %vm60 = vcmask 1041408
    %v61 = vsel %vm60, %v58, 0.0
    %v62 = vrot.slane %v61, 4
    %v63 = vadd.f32 %v61, %v62
    %v64 = vrot.slane %v63, 2
    %v65 = vadd.f32 %v63, %v64
    %v66 = vrot.slane %v65, 1
    %v67 = vadd.f32 %v65, %v66
    %v68 = vsel %vm60, %v59, 0.0
    %v69 = vrot.slane %v68, 4
    %v70 = vadd.f32 %v68, %v69
    %v71 = vrot.slane %v70, 2
    %v72 = vadd.f32 %v70, %v71
    %v73 = vrot.slane %v72, 1
    %v74 = vadd.f32 %v72, %v73
    %75 = vadd.xlane.f32.xlu0 %v67
    %v76 = vpop.xlane.xlu0 %75
    %77 = vadd.xlane.f32.xlu0 %v74
    %v78 = vpop.xlane.xlu0 %77
    %v79 = vsel %vm60, %v54, 0.0
    %v80 = vrot.slane %v79, 4
    %v81 = vadd.f32 %v79, %v80
    %v82 = vrot.slane %v81, 2
    %v83 = vadd.f32 %v81, %v82
    %v84 = vrot.slane %v83, 1
    %v85 = vadd.f32 %v83, %v84
    %v86 = vsel %vm60, %v55, 0.0
    %v87 = vrot.slane %v86, 4
    %v88 = vadd.f32 %v86, %v87
    %v89 = vrot.slane %v88, 2
    %v90 = vadd.f32 %v88, %v89
    %v91 = vrot.slane %v90, 1
    %v92 = vadd.f32 %v90, %v91
    %93 = vadd.xlane.f32.xlu0 %v85
    %v94 = vpop.xlane.xlu0 %93
    %95 = vadd.xlane.f32.xlu0 %v92
    %v96 = vpop.xlane.xlu0 %95
    %v97 = vsel %vm60, %v52, 0.0
    %v98 = vrot.slane %v97, 4
    %v99 = vadd.f32 %v97, %v98
    %v100 = vrot.slane %v99, 2
    %v101 = vadd.f32 %v99, %v100
    %v102 = vrot.slane %v101, 1
    %v103 = vadd.f32 %v101, %v102
    %v104 = vsel %vm60, %v53, 0.0
    %v105 = vrot.slane %v104, 4
    %v106 = vadd.f32 %v104, %v105
    %v107 = vrot.slane %v106, 2
    %v108 = vadd.f32 %v106, %v107
    %v109 = vrot.slane %v108, 1
    %v110 = vadd.f32 %v108, %v109
    %111 = vadd.xlane.f32.xlu0 %v103
    %v112 = vpop.xlane.xlu0 %111
    %113 = vadd.xlane.f32.xlu0 %v110
    %v114 = vpop.xlane.xlu0 %113
    %v115 = vmul.f32 %v56, %v44
    %v116 = vmul.f32 %v57, %v45
    %v117 = vsel %vm60, %v115, 0.0
    %v118 = vrot.slane %v117, 4
    %v119 = vadd.f32 %v117, %v118
    %v120 = vrot.slane %v119, 2
    %v121 = vadd.f32 %v119, %v120
    %v122 = vrot.slane %v121, 1
    %v123 = vadd.f32 %v121, %v122
    %v124 = vsel %vm60, %v116, 0.0
    %v125 = vrot.slane %v124, 4
    %v126 = vadd.f32 %v124, %v125
    %v127 = vrot.slane %v126, 2
    %v128 = vadd.f32 %v126, %v127
    %v129 = vrot.slane %v128, 1
    %v130 = vadd.f32 %v128, %v129
    %131 = vadd.xlane.f32.xlu0 %v123
    %v132 = vpop.xlane.xlu0 %131
    %133 = vadd.xlane.f32.xlu0 %v130
    %v134 = vpop.xlane.xlu0 %133
    %v135 = vsel %vm60, %v56, 0.0
    %v136 = vrot.slane %v135, 4
    %v137 = vadd.f32 %v135, %v136
    %v138 = vrot.slane %v137, 2
    %v139 = vadd.f32 %v137, %v138
    %v140 = vrot.slane %v139, 1
    %v141 = vadd.f32 %v139, %v140
    %v142 = vsel %vm60, %v57, 0.0
    %v143 = vrot.slane %v142, 4
    %v144 = vadd.f32 %v142, %v143
    %v145 = vrot.slane %v144, 2
    %v146 = vadd.f32 %v144, %v145
    %v147 = vrot.slane %v146, 1
    %v148 = vadd.f32 %v146, %v147
    %149 = vadd.xlane.f32.xlu0 %v141
    %v150 = vpop.xlane.xlu0 %149
    %151 = vadd.xlane.f32.xlu0 %v148
    %v152 = vpop.xlane.xlu0 %151
    %v153 = vmul.f32 %v76, %v112
    %v154 = vmul.f32 %v78, %v114
    %v155 = vmul.f32 %v94, %v94
    %v156 = vmul.f32 %v96, %v96
    %v157 = vsub.f32 %v153, %v155
    %v158 = vsub.f32 %v154, %v156
    %vm159 = vcmp.gt.f32.partialorder %v157, 0.0
    %vm160 = vcmp.gt.f32.partialorder %v158, 0.0
    %v161 = vsel %vm159, %v157, 1.0
    %v162 = vsel %vm160, %v158, 1.0
    %v163 = vrcp.pop %v161
    %v164 = vmul.f32 1.0, %v163
    %v165 = vrcp.pop %v162
    %v166 = vmul.f32 1.0, %v165
    %v167 = vsel %vm159, %v164, 0.0
    %v168 = vsel %vm160, %v166, 0.0
    %v169 = vmul.f32 %v112, %v132
    %v170 = vmul.f32 %v114, %v134
    %v171 = vmul.f32 %v94, %v150
    %v172 = vmul.f32 %v96, %v152
    %v173 = vsub.f32 %v169, %v171
    %v174 = vsub.f32 %v170, %v172
    %v175 = vmul.f32 %v173, %v167
    %v176 = vmul.f32 %v174, %v168
    %v177 = vsub.f32 0.0, %v94
    %v178 = vsub.f32 0.0, %v96
    %v179 = vmul.f32 %v177, %v132
    %v180 = vmul.f32 %v178, %v134
    %v181 = vmul.f32 %v76, %v150
    %v182 = vmul.f32 %v78, %v152
    %v183 = vadd.f32 %v179, %v181
    %v184 = vadd.f32 %v180, %v182
    %v185 = vmul.f32 %v183, %v167
    %v186 = vmul.f32 %v184, %v168
    %v187 = vmul.f32 %v175, %v54
    %v188 = vmul.f32 %v176, %v55
    %v189 = vmul.f32 %v185, %v52
    %v190 = vmul.f32 %v186, %v53
    %v191 = vadd.f32 %v187, %v189
    %v192 = vadd.f32 %v188, %v190
    %v193 = vsub.f32 %v191, %v56
    %v194 = vsub.f32 %v192, %v57
    %v195 = vand.u32 2147483647, %v193
    %v196 = vand.u32 2147483647, %v194
    %v197 = vsel %vm60, %v195, 0.0
    %v198 = vrot.slane %v197, 4
    %v199 = vadd.f32 %v197, %v198
    %v200 = vrot.slane %v199, 2
    %v201 = vadd.f32 %v199, %v200
    %v202 = vrot.slane %v201, 1
    %v203 = vadd.f32 %v201, %v202
    %v204 = vsel %vm60, %v196, 0.0
    %v205 = vrot.slane %v204, 4
    %v206 = vadd.f32 %v204, %v205
    %v207 = vrot.slane %v206, 2
    %v208 = vadd.f32 %v206, %v207
    %v209 = vrot.slane %v208, 1
    %v210 = vadd.f32 %v208, %v209
    %211 = vadd.xlane.f32.xlu0 %v203
    %v212 = vpop.xlane.xlu0 %211
    %213 = vadd.xlane.f32.xlu0 %v210
    %v214 = vpop.xlane.xlu0 %213
    %vm215 = vcmask 0
    %216 = vst.msk [vmem:[%s3] sm:$0x1] %vm215, %v212
    %217 = vst.msk [vmem:[%s3 + $0x1] sm:$0x1] %vm215, %v214
    %218 = vst.msk [vmem:[%s4] sm:$0x1] %vm215, %v112
    %219 = vst.msk [vmem:[%s4 + $0x1] sm:$0x1] %vm215, %v114
    // Predicated region
    $region22: #{tpu_custom_call.1} parent=1 // pred_check
      _
    $region23: #{tpu_custom_call.1} parent=1 // pred_check_branch
      %221 = sbr.rel (0) target = $region25
    $region24: #{tpu_custom_call.1} parent=1 // pred_region
      _
    $region25: #{tpu_custom_call.1} parent=1 // pred_fallthru
      _
    // Predicated region
    $region26: #{tpu_custom_call.1} parent=1 // pred_check
      _
    $region27: #{tpu_custom_call.1} parent=1 // pred_check_branch
      %223 = sbr.rel (0) target = $region29
    $region28: #{tpu_custom_call.1} parent=1 // pred_region
      _
    $region29: #{tpu_custom_call.1} parent=1 // pred_fallthru
      _
    // Predicated region
    $region30: #{tpu_custom_call.1} parent=1 // pred_check
      _
    $region31: #{tpu_custom_call.1} parent=1 // pred_check_branch
      %225 = sbr.rel (0) target = $region33
    $region32: #{tpu_custom_call.1} parent=1 // pred_region
      _
    $region33: #{tpu_custom_call.1} parent=1 // pred_fallthru
      _
    // Predicated region
    $region34: #{tpu_custom_call.1} parent=1 // pred_check
      _
    $region35: #{tpu_custom_call.1} parent=1 // pred_check_branch
      %227 = sbr.rel (0) target = $region37
    $region36: #{tpu_custom_call.1} parent=1 // pred_region
      _
    $region37: #{tpu_custom_call.1} parent=1 // pred_fallthru
      _
    %228 = vsyncpa [#allocation3], 1
    %229 = vsyncpa [#allocation5], 1

</llo_original>
